<compile_context>
chip_gen: v5e
topology: v5e:2x2
jax: 0.10.0
libtpu: 0.0.40
codegen_flags: <defaults>
</compile_context>

<pallas_src>
from functools import partial

import jax
import jax.numpy as jnp
from jax.experimental import pallas as pl
from jax.experimental.pallas import tpu as pltpu

_WIDTH = 512                            # lane-dense last dim (multiple of 128)
_TARGET_BLOCK_BYTES = 4 * 1024 * 1024   # ~4 MiB/block -> ~16 MiB live VMEM


def _mish_kernel(x_ref, o_ref, *, compute_dtype):
    x = x_ref[...].astype(compute_dtype)
    t = jnp.exp(-jnp.abs(x))            # single EUP transcendental; t in (0, 1]
    pos = x >= 0
    t2 = t + t                          # 2t
    tt = t * t                          # t^2
    # tanh(softplus(x)) as a stable rational in t (see header).
    numer = jnp.where(pos, 1.0 + t2, t2 + tt)
    denom = numer + jnp.where(pos, tt + tt, 2.0)      # shared terms with numer
    if compute_dtype == jnp.float32:
        inv = pl.reciprocal(denom, approx=True)       # EUP vrcp
        inv = inv * (2.0 - denom * inv)               # 1 Newton step -> ~f32 accurate
        y = x * (numer * inv)
    else:
        # bf16 path: approx rcp precision games are pointless at 8 mantissa bits.
        y = x * (numer / denom)
    o_ref[...] = y.astype(o_ref.dtype)


def _choose_layout(total: int, itemsize: int):
    """Pick (rows, block_rows) for the lane-dense (rows, _WIDTH) slab."""
    sublane_mult = max(8, 32 // itemsize)            # 8 f32, 16 bf16, 32 int8
    rows = pl.cdiv(total, _WIDTH)                    # actual (ceil) row count

    max_block_rows = _TARGET_BLOCK_BYTES // (_WIDTH * itemsize)
    max_block_rows = max(sublane_mult,
                         (max_block_rows // sublane_mult) * sublane_mult)

    if rows <= max_block_rows:
        # Small/medium: try to split into 2 sublane-aligned blocks so both v7x
        # TensorCores are busy; otherwise one block covering the full array
        # (block == full dims, so (8,128) divisibility is not required).
        half = pl.cdiv(rows, 2)
        block_rows = pl.cdiv(half, sublane_mult) * sublane_mult
        if block_rows >= rows:
            block_rows = rows
    else:
        block_rows = max_block_rows                  # multiple of sublane_mult
    return rows, block_rows


@jax.jit
def mish(x: jax.Array) -> jax.Array:
    """Elementwise Mish: x * tanh(softplus(x)). Any shape / float dtype."""
    orig_shape = x.shape
    dtype = x.dtype
    total = x.size
    itemsize = jnp.dtype(dtype).itemsize

    rows, block_rows = _choose_layout(total, itemsize)
    padded_total = rows * _WIDTH
    pad = padded_total - total          # < _WIDTH; 0 whenever total % 512 == 0

    flat = x.reshape(-1)
    if pad:
        # Ragged (non-512-multiple) sizes only; mish(0) == 0 so zero pad is safe.
        flat = jnp.pad(flat, (0, pad))
    x2d = flat.reshape(rows, _WIDTH)

    compute_dtype = jnp.bfloat16 if dtype == jnp.bfloat16 else jnp.float32

    grid = (pl.cdiv(rows, block_rows),)   # partial edge block handled by Pallas
    out2d = pl.pallas_call(
        partial(_mish_kernel, compute_dtype=compute_dtype),
        out_shape=jax.ShapeDtypeStruct((rows, _WIDTH), dtype),
        grid_spec=pltpu.PrefetchScalarGridSpec(
            num_scalar_prefetch=0,
            grid=grid,
            in_specs=[pl.BlockSpec((block_rows, _WIDTH), lambda i: (i, 0))],
            out_specs=pl.BlockSpec((block_rows, _WIDTH), lambda i: (i, 0)),
        ),
        compiler_params=pltpu.CompilerParams(
            dimension_semantics=("parallel",),
            vmem_limit_bytes=48 * 1024 * 1024,
        ),
        cost_estimate=pl.CostEstimate(
            flops=12 * padded_total,
            transcendentals=2 * padded_total,
            bytes_accessed=2 * padded_total * itemsize,
        ),
    )(x2d)

    out_flat = out2d.reshape(-1)
    if pad:
        out_flat = out_flat[:total]
    return out_flat.reshape(orig_shape)


if __name__ == "__main__":
    key = jax.random.PRNGKey(0)

    # Small NCHW input consistent with a conv activation (B, C, H, W).
    x = jax.random.normal(key, (2, 4, 16, 16), dtype=jnp.float32)
    y = jax.block_until_ready(mish(x))
    ref = x * jnp.tanh(jax.nn.softplus(x))
    assert y.shape == x.shape and y.dtype == x.dtype
    assert jnp.allclose(y, ref, atol=1e-5, rtol=1e-5), float(jnp.max(jnp.abs(y - ref)))

    # Ragged (non-512-multiple) size exercises the small-pad fallback path.
    xr = jax.random.normal(jax.random.PRNGKey(1), (3, 5, 7, 11), dtype=jnp.float32)
    yr = jax.block_until_ready(mish(xr))
    refr = xr * jnp.tanh(jax.nn.softplus(xr))
    assert jnp.allclose(yr, refr, atol=1e-5, rtol=1e-5), float(jnp.max(jnp.abs(yr - refr)))

    print("KERNEL_OK")
</pallas_src>

<mosaic_0001>
module attributes {stable_mosaic.version = 11 : i64} {
  func.func @_mish_kernel(%arg0: i32, %arg1: memref<4x512xf32, #tpu.memory_space<vmem>>, %arg2: memref<4x512xf32, #tpu.memory_space<vmem>>) attributes {dimension_semantics = [#tpu.dimension_semantics<parallel>], iteration_bounds = array<i64: 1>, scalar_prefetch = 0 : i64, scratch_operands = 0 : i64, tpu.core_type = #tpu.core_type<tc>, window_params = [{transform_indices = @transform_0, window_bounds = array<i64: 4, 512>}, {transform_indices = @transform_1, window_bounds = array<i64: 4, 512>}]} {
    %c0 = arith.constant 0 : index
    %c0_0 = arith.constant 0 : index
    %0 = vector.load %arg1[%c0, %c0_0] : memref<4x512xf32, #tpu.memory_space<vmem>>, vector<4x512xf32>
    %1 = math.absf %0 : vector<4x512xf32>
    %cst = arith.constant 0.000000e+00 : f32
    %2 = vector.broadcast %cst : f32 to vector<4x512xf32>
    %3 = arith.subf %2, %1 : vector<4x512xf32>
    %4 = math.exp %3 : vector<4x512xf32>
    %cst_1 = arith.constant 0.000000e+00 : f32
    %5 = vector.broadcast %cst_1 : f32 to vector<4x512xf32>
    %6 = arith.cmpf oge, %0, %5 : vector<4x512xf32>
    %7 = arith.addf %4, %4 : vector<4x512xf32>
    %8 = arith.mulf %4, %4 : vector<4x512xf32>
    %cst_2 = arith.constant 1.000000e+00 : f32
    %9 = vector.broadcast %cst_2 : f32 to vector<4x512xf32>
    %10 = arith.addf %9, %7 : vector<4x512xf32>
    %11 = arith.addf %7, %8 : vector<4x512xf32>
    %12 = arith.select %6, %10, %11 : vector<4x512xi1>, vector<4x512xf32>
    %13 = arith.addf %8, %8 : vector<4x512xf32>
    %cst_3 = arith.constant 2.000000e+00 : f32
    %14 = vector.broadcast %cst_3 : f32 to vector<4x512xf32>
    %15 = arith.select %6, %13, %14 : vector<4x512xi1>, vector<4x512xf32>
    %16 = arith.addf %12, %15 : vector<4x512xf32>
    %17 = tpu.reciprocal %16 {approx = true} : vector<4x512xf32> -> vector<4x512xf32>
    %18 = arith.mulf %16, %17 : vector<4x512xf32>
    %cst_4 = arith.constant 2.000000e+00 : f32
    %19 = vector.broadcast %cst_4 : f32 to vector<4x512xf32>
    %20 = arith.subf %19, %18 : vector<4x512xf32>
    %21 = arith.mulf %17, %20 : vector<4x512xf32>
    %22 = arith.mulf %12, %21 : vector<4x512xf32>
    %23 = arith.mulf %0, %22 : vector<4x512xf32>
    %c0_5 = arith.constant 0 : index
    %c0_6 = arith.constant 0 : index
    %24 = vector.load %arg2[%c0_5, %c0_6] : memref<4x512xf32, #tpu.memory_space<vmem>>, vector<4x512xf32>
    tpu.vector_store %arg2[%c0_5, %c0_6], %23 {strides = array<i32>} : memref<4x512xf32, #tpu.memory_space<vmem>>, vector<4x512xf32>,
    return
  }
  func.func @transform_0(%arg0: i32) -> (i32, i32) {
    %c0_i32 = arith.constant 0 : i32
    %c0_i32_0 = arith.constant 0 : i32
    return %arg0, %c0_i32 : i32, i32
  }
  func.func @transform_1(%arg0: i32) -> (i32, i32) {
    %c0_i32 = arith.constant 0 : i32
    %c0_i32_0 = arith.constant 0 : i32
    return %arg0, %c0_i32 : i32, i32
  }
}

</mosaic_0001>

<llo_original>
// kernel: mish.1
$region0: #{mish.1}
  #allocation0 [shape = 'u32[]', space=smem, size = 0x4, offset = 0x4, fixed_abs, tag = 'smem constant byte address 0x4 - core index']
  #allocation1 [shape = 'u32[72,128]{1,0:T(1,128)}', space=vmem, size = 0x9000, scoped, tag = 'internal scratch']
  %s0 = inlined_call_operand.vmem [shape: f32[4,512], index: 0, kind: input, shape index: {}]
  %s1 = inlined_call_operand.vmem [shape: f32[4,512], index: 1, kind: output, shape index: {}]
  %s2 = sld [smem:[#allocation0]]
  $region14: #{mish.1} parent=0
    _
  %s4 = ssub.s32 1, %s2
  %s5 = scalar_select 0, %s4, %s2
  // Predicated region
  $region2: #{mish.1} parent=0 // pred_check
    _
  $region3: #{mish.1} parent=0 // pred_check_branch
    %7 = sbr.rel (0) target = $region5
  $region4: #{mish.1} parent=0 // pred_region
    _
  $region5: #{mish.1} parent=0 // pred_fallthru
    _
  %v8 = vld [vmem:[%s0] sm:$0xff]
  %v9 = vld [vmem:[%s0 + $0x8] sm:$0xff]
  %v10 = vand.u32 2147483647, %v8
  %v11 = vand.u32 2147483647, %v9
  %v12 = vsub.f32 0.0, %v10
  %v13 = vsub.f32 0.0, %v11
  %v14 = vmul.f32 %v12, 1.442695
  %v15 = vpow.pop %v14
  %v16 = vmul.f32 %v13, 1.442695
  %v17 = vpow.pop %v16
  %vm18 = vcmp.ge.f32.partialorder %v8, 0.0
  %vm19 = vcmp.ge.f32.partialorder %v9, 0.0
  %v20 = vadd.f32 %v15, %v15
  %v21 = vadd.f32 %v17, %v17
  %v22 = vmul.f32 %v15, %v15
  %v23 = vmul.f32 %v17, %v17
  %v24 = vadd.f32 %v20, 1.0
  %v25 = vadd.f32 %v21, 1.0
  %v26 = vadd.f32 %v20, %v22
  %v27 = vadd.f32 %v21, %v23
  %v28 = vsel %vm18, %v24, %v26
  %v29 = vsel %vm19, %v25, %v27
  %v30 = vadd.f32 %v22, %v22
  %v31 = vadd.f32 %v23, %v23
  %v32 = vsel %vm18, %v30, 2.0
  %v33 = vsel %vm19, %v31, 2.0
  %v34 = vadd.f32 %v28, %v32
  %v35 = vadd.f32 %v29, %v33
  %v36 = vrcp.pop %v34
  %v37 = vrcp.pop %v35
  %v38 = vmul.f32 %v34, %v36
  %v39 = vmul.f32 %v35, %v37
  %v40 = vsub.f32 2.0, %v38
  %v41 = vsub.f32 2.0, %v39
  %v42 = vmul.f32 %v36, %v40
  %v43 = vmul.f32 %v37, %v41
  %v44 = vmul.f32 %v28, %v42
  %v45 = vmul.f32 %v29, %v43
  %v46 = vmul.f32 %v8, %v44
  %v47 = vmul.f32 %v9, %v45
  %48 = vst [vmem:[%s1] sm:$0xff] %v46
  %49 = vst [vmem:[%s1 + $0x8] sm:$0xff] %v47
  // Predicated region
  $region6: #{mish.1} parent=0 // pred_check
    _
  $region7: #{mish.1} parent=0 // pred_check_branch
    %51 = sbr.rel (0) target = $region9
  $region8: #{mish.1} parent=0 // pred_region
    _
  $region9: #{mish.1} parent=0 // pred_fallthru
    _
  // Predicated region
  $region10: #{mish.1} parent=0 // pred_check
    _
  $region11: #{mish.1} parent=0 // pred_check_branch
    %53 = sbr.rel (0) target = $region13
  $region12: #{mish.1} parent=0 // pred_region
    _
  $region13: #{mish.1} parent=0 // pred_fallthru
    _

</llo_original>
